<compile_context>
chip_gen: v5e
topology: v5e:2x2
jax: 0.10.0
libtpu: 0.0.40
codegen_flags: <defaults>
</compile_context>

<pallas_src>
import functools

import jax
import jax.numpy as jnp
from jax.experimental import pallas as pl
from jax.experimental.pallas import tpu as pltpu


def _round_up(x: int, m: int) -> int:
    return (x + m - 1) // m * m


def uv_encoder_kernel(self_ref, neigh_ref, w_self_ref, w_neigh_ref, b_ref, out_ref):
    # self_ref:   [tm, D] bf16  self node embeddings (row tile, streamed)
    # neigh_ref:  [tm, D] bf16  aggregated neighbor features (row tile, streamed)
    # w_self_ref: [D, D]  bf16  linear1.weight[:, :D].T  (constant index_map -> VMEM resident)
    # w_neigh_ref:[D, D]  bf16  linear1.weight[:, D:].T  (constant index_map -> VMEM resident)
    # b_ref:      [1, D]  f32   linear1.bias
    # out_ref:    [tm, D] f32
    #
    # Split matmul instead of concat + single dot: two MXU pushes accumulating in f32,
    # no [tm, 2D] "combined" buffer is ever materialized.
    y = jnp.dot(self_ref[...], w_self_ref[...], preferred_element_type=jnp.float32)
    y = y + jnp.dot(neigh_ref[...], w_neigh_ref[...], preferred_element_type=jnp.float32)
    out_ref[...] = jnp.maximum(y + b_ref[...], 0.0)


def _hw_vmem_limit_bytes() -> int:
    """Generation-aware scoped-VMEM limit: ~3/4 of physical per-core VMEM, capped at 100 MiB."""
    try:
        cap = int(pltpu.get_tpu_info().vmem_capacity_bytes)
    except Exception:
        cap = 64 * 1024 * 1024  # conservative fallback = v7x per-TC VMEM
    return min(int(cap * 3 // 4), 100 * 1024 * 1024)


def _plan_row_tile(n_rows: int, d: int, vmem_limit: int) -> int:
    """Pick the largest sublane-aligned row tile whose double-buffered footprint fits."""
    d_lanes = _round_up(d, 128)   # VMEM blocks are lane-padded to 128 regardless of D
    d_sub = _round_up(d, 16)
    # Resident blocks (constant index_map), counted with Pallas' default double buffering:
    resident = 2 * (2 * d_sub * d_lanes * 2) + 2 * (8 * d_lanes * 4)
    # Streamed VMEM per row across double buffers: 2 bf16 input tiles + 1 f32 output tile.
    per_row = 2 * (2 * d_lanes * 2 + d_lanes * 4)
    budget = max(vmem_limit // 2 - resident, 1 << 20)
    tm = max(8, (budget // per_row) // 8 * 8)
    tm = min(tm, 32768)                      # per-step DMA already >> per-step overhead
    tm = min(tm, _round_up(n_rows, 8))       # tiny batches stay a single block
    return tm


@functools.partial(jax.jit, static_argnames=("tm", "vmem_limit"))
def _uv_encoder_pallas(nodes, embedding_table, neigh_feats, w, b, *, tm, vmem_limit):
    N, D = neigh_feats.shape

    # Glue ops. NOTE: XLA does NOT fuse this gather into the pallas_call operand — self_feats
    # is materialized (in bf16) in HBM and re-read by the kernel.
    # TODO(synk): fuse the gather in-kernel (scalar-prefetched node ids + manual DMA gather
    # from an ANY-space table); per-row DMAs conflict with the large row tiles needed at
    # small D, so it is left to XLA here.
    self_feats = embedding_table[nodes].astype(jnp.bfloat16)     # [N, D]
    neigh_bf16 = neigh_feats.astype(jnp.bfloat16)                # [N, D]
    w_self = w[:, :D].T.astype(jnp.bfloat16)                     # [D, D]
    w_neigh = w[:, D:].T.astype(jnp.bfloat16)                    # [D, D]
    b2d = b.reshape(1, D).astype(jnp.float32)                    # [1, D]

    grid = (pl.cdiv(N, tm),)   # ragged grid: last partial block is masked, no jnp.pad copy

    return pl.pallas_call(
        uv_encoder_kernel,
        out_shape=jax.ShapeDtypeStruct((N, D), jnp.float32),
        grid=grid,
        in_specs=[
            pl.BlockSpec((tm, D), lambda i: (i, 0)),   # self rows: streamed per tile
            pl.BlockSpec((tm, D), lambda i: (i, 0)),   # neigh rows: streamed per tile
            pl.BlockSpec((D, D), lambda i: (0, 0)),    # weight half: VMEM resident
            pl.BlockSpec((D, D), lambda i: (0, 0)),    # weight half: VMEM resident
            pl.BlockSpec((1, D), lambda i: (0, 0)),    # bias: VMEM resident
        ],
        out_specs=pl.BlockSpec((tm, D), lambda i: (i, 0)),
        compiler_params=pltpu.CompilerParams(
            # "parallel" only shards the row grid across v7x's 2 TCs; it is a no-op on
            # single-TC v5e/v6e. tm is sized so per-TC steps stay above the overhead knee.
            dimension_semantics=("parallel",),
            vmem_limit_bytes=vmem_limit,
        ),
    )(self_feats, neigh_bf16, w_self, w_neigh, b2d)


def uv_encoder_forward(nodes, embedding_table, neigh_feats, w, b):
    """nodes: [N] int32, embedding_table: [V, D], neigh_feats: [N, D],
    w: [D, 2D] (PyTorch nn.Linear.weight layout), b: [D]. Returns relu(cat(self, neigh) @ w.T + b)."""
    N, D = neigh_feats.shape
    vmem_limit = _hw_vmem_limit_bytes()
    tm = _plan_row_tile(N, D, vmem_limit)
    return _uv_encoder_pallas(nodes, embedding_table, neigh_feats, w, b,
                              tm=tm, vmem_limit=vmem_limit)


if __name__ == "__main__":
    # TODO(synk): the Neo4j query (self.db.run) and aggregator.forward have no Pallas
    # equivalent; neigh_feats is synthesized here as the aggregator's dense output.
    key = jax.random.PRNGKey(0)
    k1, k2, k3, k4, k5 = jax.random.split(key, 5)

    num_nodes_total = 64   # embedding-table rows (users/items in the "graph")
    embed_dim = 32         # self.embed_dim
    batch = 8              # len(nodes)

    embedding_table = jax.random.normal(k1, (num_nodes_total, embed_dim), jnp.float32)
    neigh_feats = jax.random.normal(k2, (batch, embed_dim), jnp.float32)
    nodes = jax.random.randint(k3, (batch,), 0, num_nodes_total, jnp.int32)

    # nn.Linear(2*embed_dim, embed_dim): weight [D, 2D], bias [D]
    bound = 1.0 / jnp.sqrt(2.0 * embed_dim)
    w = jax.random.uniform(k4, (embed_dim, 2 * embed_dim), jnp.float32, -bound, bound)
    b = jax.random.uniform(k5, (embed_dim,), jnp.float32, -bound, bound)

    out = uv_encoder_forward(nodes, embedding_table, neigh_feats, w, b)
    out = jax.block_until_ready(out)

    # Reference 1 (tight): the exact math the kernel implements — bf16 inputs, f32 accumulate.
    self_feats = embedding_table[nodes]
    ref_tight = jnp.maximum(
        jnp.dot(self_feats.astype(jnp.bfloat16), w[:, :embed_dim].T.astype(jnp.bfloat16),
                preferred_element_type=jnp.float32)
        + jnp.dot(neigh_feats.astype(jnp.bfloat16), w[:, embed_dim:].T.astype(jnp.bfloat16),
                  preferred_element_type=jnp.float32)
        + b, 0.0)
    # Reference 2 (loose): the original full-f32 PyTorch forward (cat + linear + relu).
    combined = jnp.concatenate([self_feats, neigh_feats], axis=1)
    ref_f32 = jnp.maximum(combined @ w.T + b, 0.0)

    assert out.shape == ref_f32.shape, "shape mismatch vs reference"
    assert jnp.allclose(out, ref_tight, atol=1e-3, rtol=1e-3), "mismatch vs bf16/f32-acc reference"
    assert jnp.allclose(out, ref_f32, atol=5e-2, rtol=5e-2), "mismatch vs f32 reference"

    print("KERNEL_OK")
</pallas_src>

<mosaic_0001>
module attributes {stable_mosaic.version = 11 : i64} {
  func.func @uv_encoder_kernel(%arg0: i32, %arg1: memref<8x32xbf16, #tpu.memory_space<vmem>>, %arg2: memref<8x32xbf16, #tpu.memory_space<vmem>>, %arg3: memref<32x32xbf16, #tpu.memory_space<vmem>>, %arg4: memref<32x32xbf16, #tpu.memory_space<vmem>>, %arg5: memref<1x32xf32, #tpu.memory_space<vmem>>, %arg6: memref<8x32xf32, #tpu.memory_space<vmem>>) attributes {dimension_semantics = [#tpu.dimension_semantics<parallel>], iteration_bounds = array<i64: 1>, scalar_prefetch = 0 : i64, scratch_operands = 0 : i64, tpu.core_type = #tpu.core_type<tc>, window_params = [{transform_indices = @transform_0, window_bounds = array<i64: 8, 32>}, {transform_indices = @transform_1, window_bounds = array<i64: 8, 32>}, {pipeline_mode = #tpu.pipeline_mode<synchronous>, transform_indices = @transform_2, window_bounds = array<i64: 32, 32>}, {pipeline_mode = #tpu.pipeline_mode<synchronous>, transform_indices = @transform_3, window_bounds = array<i64: 32, 32>}, {pipeline_mode = #tpu.pipeline_mode<synchronous>, transform_indices = @transform_4, window_bounds = array<i64: 1, 32>}, {transform_indices = @transform_5, window_bounds = array<i64: 8, 32>}]} {
    %c0 = arith.constant 0 : index
    %c0_0 = arith.constant 0 : index
    %0 = vector.load %arg1[%c0, %c0_0] : memref<8x32xbf16, #tpu.memory_space<vmem>>, vector<8x32xbf16>
    %c0_1 = arith.constant 0 : index
    %c0_2 = arith.constant 0 : index
    %1 = vector.load %arg3[%c0_1, %c0_2] : memref<32x32xbf16, #tpu.memory_space<vmem>>, vector<32x32xbf16>
    %cst = arith.constant dense<0.000000e+00> : vector<8x32xf32>
    %2 = tpu.matmul %0, %1, %cst {dimension_numbers = #tpu.dot_dimension_numbers<[1], [0], [0], [1], [0, 0, 1, 1], [], []>} : vector<8x32xbf16>, vector<32x32xbf16>, vector<8x32xf32> -> vector<8x32xf32>
    %c0_3 = arith.constant 0 : index
    %c0_4 = arith.constant 0 : index
    %3 = vector.load %arg2[%c0_3, %c0_4] : memref<8x32xbf16, #tpu.memory_space<vmem>>, vector<8x32xbf16>
    %c0_5 = arith.constant 0 : index
    %c0_6 = arith.constant 0 : index
    %4 = vector.load %arg4[%c0_5, %c0_6] : memref<32x32xbf16, #tpu.memory_space<vmem>>, vector<32x32xbf16>
    %cst_7 = arith.constant dense<0.000000e+00> : vector<8x32xf32>
    %5 = tpu.matmul %3, %4, %cst_7 {dimension_numbers = #tpu.dot_dimension_numbers<[1], [0], [0], [1], [0, 0, 1, 1], [], []>} : vector<8x32xbf16>, vector<32x32xbf16>, vector<8x32xf32> -> vector<8x32xf32>
    %6 = arith.addf %2, %5 : vector<8x32xf32>
    %c0_8 = arith.constant 0 : index
    %c0_9 = arith.constant 0 : index
    %7 = vector.load %arg5[%c0_8, %c0_9] : memref<1x32xf32, #tpu.memory_space<vmem>>, vector<1x32xf32>
    %8 = vector.broadcast %7 : vector<1x32xf32> to vector<8x32xf32>
    %9 = arith.addf %6, %8 : vector<8x32xf32>
    %cst_10 = arith.constant 0.000000e+00 : f32
    %10 = vector.broadcast %cst_10 : f32 to vector<8x32xf32>
    %11 = arith.maximumf %9, %10 : vector<8x32xf32>
    %c0_11 = arith.constant 0 : index
    %c0_12 = arith.constant 0 : index
    %12 = vector.load %arg6[%c0_11, %c0_12] : memref<8x32xf32, #tpu.memory_space<vmem>>, vector<8x32xf32>
    tpu.vector_store %arg6[%c0_11, %c0_12], %11 {strides = array<i32>} : memref<8x32xf32, #tpu.memory_space<vmem>>, vector<8x32xf32>,
    return
  }
  func.func @transform_0(%arg0: i32) -> (i32, i32) {
    %c0_i32 = arith.constant 0 : i32
    %c0_i32_0 = arith.constant 0 : i32
    return %arg0, %c0_i32 : i32, i32
  }
  func.func @transform_1(%arg0: i32) -> (i32, i32) {
    %c0_i32 = arith.constant 0 : i32
    %c0_i32_0 = arith.constant 0 : i32
    return %arg0, %c0_i32 : i32, i32
  }
  func.func @transform_2(%arg0: i32) -> (i32, i32) {
    %c0_i32 = arith.constant 0 : i32
    %c0_i32_0 = arith.constant 0 : i32
    %c0_i32_1 = arith.constant 0 : i32
    return %c0_i32, %c0_i32_0 : i32, i32
  }
  func.func @transform_3(%arg0: i32) -> (i32, i32) {
    %c0_i32 = arith.constant 0 : i32
    %c0_i32_0 = arith.constant 0 : i32
    %c0_i32_1 = arith.constant 0 : i32
    return %c0_i32, %c0_i32_0 : i32, i32
  }
  func.func @transform_4(%arg0: i32) -> (i32, i32) {
    %c0_i32 = arith.constant 0 : i32
    %c0_i32_0 = arith.constant 0 : i32
    %c0_i32_1 = arith.constant 0 : i32
    return %c0_i32, %c0_i32_0 : i32, i32
  }
  func.func @transform_5(%arg0: i32) -> (i32, i32) {
    %c0_i32 = arith.constant 0 : i32
    %c0_i32_0 = arith.constant 0 : i32
    return %arg0, %c0_i32 : i32, i32
  }
}

</mosaic_0001>

<llo_original>
// kernel: _uv_encoder_pallas.1
$region0: #{_uv_encoder_pallas.1}
  #allocation0 [shape = 'u32[]', space=smem, size = 0x4, offset = 0x4, fixed_abs, tag = 'smem constant byte address 0x4 - core index']
  #allocation1 [shape = 'u32[72,128]{1,0:T(1,128)}', space=vmem, size = 0x9000, scoped, tag = 'internal scratch']
  %s0 = inlined_call_operand.vmem [shape: bf16[8,32], index: 0, kind: input, shape index: {}]
  %s1 = inlined_call_operand.vmem [shape: bf16[8,32], index: 1, kind: input, shape index: {}]
  %s2 = inlined_call_operand.vmem [shape: bf16[32,32], index: 2, kind: input, shape index: {}]
  %s3 = inlined_call_operand.vmem [shape: bf16[32,32], index: 3, kind: input, shape index: {}]
  %s4 = inlined_call_operand.vmem [shape: f32[1,32], index: 4, kind: input, shape index: {}]
  %s5 = inlined_call_operand.hbm [shape: f32[8,32], index: 5, kind: output, shape index: {}]
  %s6 = sld [smem:[#allocation0]]
  $region30: #{_uv_encoder_pallas.1} parent=0
    _
  %s8 = ssub.s32 1, %s6
  %s9 = scalar_select 0, %s8, %s6
  $region1: #{_uv_encoder_pallas.1} parent=0
    #allocation2 [shape = 'u8[4096]{0}', space=vmem, size = 0x1000, scoped, tag = 'output window, operand 0, single buffered']
    #allocation3 [shape = 's32[1]{0}', space=sflag, size = 0x4, scoped, tag = 'scoped memory for _uv_encoder_pallas.1']
    %10 = vsyncpa [#allocation3], 0
    // Predicated region
    $region2: #{_uv_encoder_pallas.1} parent=1 // pred_check
      _
    $region3: #{_uv_encoder_pallas.1} parent=1 // pred_check_branch
      %12 = sbr.rel (0) target = $region5
    $region4: #{_uv_encoder_pallas.1} parent=1 // pred_region
      _
    $region5: #{_uv_encoder_pallas.1} parent=1 // pred_fallthru
      _
    // Predicated region
    $region6: #{_uv_encoder_pallas.1} parent=1 // pred_check
      _
    $region7: #{_uv_encoder_pallas.1} parent=1 // pred_check_branch
      %14 = sbr.rel (0) target = $region9
    $region8: #{_uv_encoder_pallas.1} parent=1 // pred_region
      _
    $region9: #{_uv_encoder_pallas.1} parent=1 // pred_fallthru
      _
    // Predicated region
    $region10: #{_uv_encoder_pallas.1} parent=1 // pred_check
      _
    $region11: #{_uv_encoder_pallas.1} parent=1 // pred_check_branch
      %16 = sbr.rel (0) target = $region13
    $region12: #{_uv_encoder_pallas.1} parent=1 // pred_region
      _
    $region13: #{_uv_encoder_pallas.1} parent=1 // pred_fallthru
      _
    // Predicated region
    $region14: #{_uv_encoder_pallas.1} parent=1 // pred_check
      _
    $region15: #{_uv_encoder_pallas.1} parent=1 // pred_check_branch
      %18 = sbr.rel (0) target = $region17
    $region16: #{_uv_encoder_pallas.1} parent=1 // pred_region
      _
    $region17: #{_uv_encoder_pallas.1} parent=1 // pred_fallthru
      _
    // Predicated region
    $region18: #{_uv_encoder_pallas.1} parent=1 // pred_check
      _
    $region19: #{_uv_encoder_pallas.1} parent=1 // pred_check_branch
      %20 = sbr.rel (0) target = $region21
    $region20: #{_uv_encoder_pallas.1} parent=1 // pred_region
      _
    $region21: #{_uv_encoder_pallas.1} parent=1 // pred_fallthru
      _
    %v22 = vld [vmem:[%s0] sm:$0xf]
    %v23 = vld [vmem:[%s2] sm:$0xf]
    %v24 = vld [vmem:[%s2 + $0x4] sm:$0xf]
    %v25 = vld [vmem:[%s2 + $0x8] sm:$0xf]
    %v26 = vld [vmem:[%s2 + $0xc] sm:$0xf]
    %v27 = vld [vmem:[%s1] sm:$0xf]
    %v28 = vld [vmem:[%s3] sm:$0xf]
    %v29 = vld [vmem:[%s3 + $0x4] sm:$0xf]
    %v30 = vld [vmem:[%s3 + $0x8] sm:$0xf]
    %v31 = vld [vmem:[%s3 + $0xc] sm:$0xf]
    %v36 = vunpack.c.l.b16 %v28
    %v37 = vunpack.c.l.b16 %v29
    %v38 = vunpack.c.l.b16 %v30
    %v39 = vunpack.c.l.b16 %v31
    %v40 = vpack.c.b16 %v37, %v36
    %v41 = vpack.c.b16 %v39, %v38
    %vm44 = vcmask 261120
    %v46 = vsel %vm44, %v27, 0
    %48 = vmatpush.bf16.msra.mxu0 0
    %49 = vmatpush.bf16.msra.mxu0 0
    %50 = vmatpush.bf16.msra.mxu0 0
    %51 = vmatpush.bf16.msra.mxu0 0
    %52 = vmatpush.bf16.msra.mxu0 0
    %53 = vmatpush.bf16.msra.mxu0 0
    %54 = vmatpush.bf16.msra.mxu0 %v41
    %55 = vmatpush.bf16.msra.mxu0 %v40
    %56 = vmatmul.bf16.gmra.mxu0 %v46
    %v57 = vpop.f32.mrf.mxu0
    %v58 = vadd.f32 0.0, %v57
    %v59 = vpop.f32.mrf.mxu0
    %60 = vdwg.mxu0
    %v65 = vunpack.c.l.b16 %v23
    %v66 = vunpack.c.l.b16 %v24
    %v67 = vunpack.c.l.b16 %v25
    %v68 = vunpack.c.l.b16 %v26
    %v69 = vpack.c.b16 %v66, %v65
    %v70 = vpack.c.b16 %v68, %v67
    %v74 = vsel %vm44, %v22, 0
    %76 = vmatpush.bf16.msra.mxu0 0
    %77 = vmatpush.bf16.msra.mxu0 0
    %78 = vmatpush.bf16.msra.mxu0 0
    %79 = vmatpush.bf16.msra.mxu0 0
    %80 = vmatpush.bf16.msra.mxu0 0
    %81 = vmatpush.bf16.msra.mxu0 0
    %82 = vmatpush.bf16.msra.mxu0 %v70
    %83 = vmatpush.bf16.msra.mxu0 %v69
    %84 = vmatmul.bf16.gmra.mxu0 %v74
    %v85 = vpop.f32.mrf.mxu0
    %v86 = vadd.f32 %v58, %v85
    %v87 = vpop.f32.mrf.mxu0
    %88 = vdwg.mxu0
    %v89 = vld [vmem:[%s4] sm:$0x1]
    %v91 = vperm.slane %v89, 0
    %v93 = vadd.f32 %v86, %v91
    %v94 = vmax.f32 %v93, 0.0
    %95 = vst.msk [vmem:[#allocation2] sm:$0xff] %vm44, %v94
    // Predicated region
    $region22: #{_uv_encoder_pallas.1} parent=1 // pred_check
      _
    $region23: #{_uv_encoder_pallas.1} parent=1 // pred_check_branch
      %97 = sbr.rel (0) target = $region25
    $region24: #{_uv_encoder_pallas.1} parent=1 // pred_region
      %99 = vsyncadd [#allocation3], 0
      %s101 = sshll.u32 [#allocation2], 4
      %s102 = int_to_ptr.vmem [resolvable:$true] %s101
      %s103 = sshll.u32 %s5, 4
      %s104 = int_to_ptr.hbm [resolvable:$true] %s103
      %106 = dma.vmem_to_hbm [thread:$0]  %s102, 128, %s104, [#allocation3]
    $region25: #{_uv_encoder_pallas.1} parent=1 // pred_fallthru
      _
    // Predicated region
    $region26: #{_uv_encoder_pallas.1} parent=1 // pred_check
      _
    $region27: #{_uv_encoder_pallas.1} parent=1 // pred_check_branch
      %108 = sbr.rel (0) target = $region29
    $region28: #{_uv_encoder_pallas.1} parent=1 // pred_region
      %110 = dma.done [#allocation3], 128
    $region29: #{_uv_encoder_pallas.1} parent=1 // pred_fallthru
      _
    %111 = vsyncpa [#allocation3], 1

</llo_original>
